<compile_context>
chip_gen: v7x
topology: tpu7x:2x2x1
jax: 0.10.0
libtpu: 0.0.40
codegen_flags: <defaults>
</compile_context>

<pallas_src>
import jax
import jax.numpy as jnp
from jax.experimental import pallas as pl
from jax.experimental.pallas import tpu as pltpu


def _copy_kernel(x_ref, o_ref):
    # Pure pass-through of the current VMEM tile (unmasked, lane-dense).
    o_ref[...] = x_ref[...]


def identity_pallas(x, *, force_kernel=False):
    """Identity pass over `x`.

    Uses a lane-dense, row-tiled Pallas copy when the element count is
    compatible with full packed-vreg tiles; otherwise (or for small inputs
    when not forced) returns `x` unchanged — the reference forward performs
    no computation, so a physical copy buys nothing semantically.
    """
    orig_shape = x.shape
    dtype = x.dtype
    total = int(x.size)
    itemsize = jnp.dtype(dtype).itemsize

    LANE = 128
    # Packed sublane count: 8 for f32, 16 for bf16/f16, 32 for int8/fp8.
    sub_pack = max(8, 32 // itemsize)
    min_tile = sub_pack * LANE

    # Ragged totals would need wrapper pad/slice copies that dominate a
    # mem-bound copy -> pass through (semantically identical).
    if total == 0 or total % min_tile != 0:
        return x

    # For tiny inputs the launch + grid-step overhead dwarfs the copy; skip
    # the kernel unless explicitly requested (e.g. for testing).
    if not force_kernel and total * itemsize <= (2 << 20):
        return x

    # Lane-dense slab (rows, W): W is a multiple of 128; prefer wider lanes
    # while keeping rows a multiple of the packed sublane count.
    W = LANE
    for cand in (1024, 512, 256, 128):
        if total % cand == 0 and (total // cand) % sub_pack == 0:
            W = cand
            break
    rows = total // W
    slab = x.reshape(rows, W)

    # Row-axis tiling: each block is a single contiguous HBM run.
    # Target ~2 MiB per tile (4 live buffers -> 8 MiB, safe for v5e's 16 MiB
    # default scoped VMEM), multiple of sub_pack, and dividing `rows` evenly
    # so the last grid step is a full (unmasked) block.
    bytes_per_row = W * itemsize
    target_rows = max(sub_pack, ((2 << 20) // bytes_per_row // sub_pack) * sub_pack)
    tile_rows = min(rows, target_rows)
    while rows % tile_rows != 0:
        tile_rows -= sub_pack  # terminates: sub_pack always divides rows
    grid_r = rows // tile_rows

    out = pl.pallas_call(
        _copy_kernel,
        out_shape=jax.ShapeDtypeStruct((rows, W), dtype),
        grid_spec=pltpu.PrefetchScalarGridSpec(
            num_scalar_prefetch=0,
            grid=(grid_r,),
            in_specs=[pl.BlockSpec((tile_rows, W), lambda i: (i, 0))],
            out_specs=pl.BlockSpec((tile_rows, W), lambda i: (i, 0)),
        ),
        compiler_params=pltpu.CompilerParams(
            dimension_semantics=("parallel",),
        ),
    )(slab)

    return out.reshape(orig_shape)


def decoder_forward(inputs):
    """Exact semantic match of Decoder.forward: returns None."""
    del inputs
    return None


if __name__ == "__main__":
    key = jax.random.PRNGKey(0)
    # Small NCHW input consistent with a conv-style decoder input.
    shape, dtype = (2, 4, 16, 16), jnp.float32
    x = jax.random.normal(key, shape, dtype=dtype)

    # Run the Pallas identity kernel once (forced: the input is tiny and the
    # fast path would otherwise skip the kernel entirely).
    y = identity_pallas(x, force_kernel=True)
    jax.block_until_ready(y)

    # No buffer donation -> x remains valid; compare directly.
    assert y.shape == shape and y.dtype == dtype
    assert bool(jnp.allclose(y, x))

    # The Decoder forward itself returns None, matching the PyTorch module.
    result = decoder_forward(y)
    assert result is None

    print("KERNEL_OK")
</pallas_src>

<mosaic_0001>
module attributes {stable_mosaic.version = 11 : i64} {
  func.func @_copy_kernel(%arg0: i32, %arg1: memref<8x256xf32, #tpu.memory_space<vmem>>, %arg2: memref<8x256xf32, #tpu.memory_space<vmem>>) attributes {dimension_semantics = [#tpu.dimension_semantics<parallel>], iteration_bounds = array<i64: 1>, scalar_prefetch = 0 : i64, scratch_operands = 0 : i64, tpu.core_type = #tpu.core_type<tc>, window_params = [{transform_indices = @transform_0, window_bounds = array<i64: 8, 256>}, {transform_indices = @transform_1, window_bounds = array<i64: 8, 256>}]} {
    %c0 = arith.constant 0 : index
    %c0_0 = arith.constant 0 : index
    %0 = vector.load %arg1[%c0, %c0_0] : memref<8x256xf32, #tpu.memory_space<vmem>>, vector<8x256xf32>
    %c0_1 = arith.constant 0 : index
    %c0_2 = arith.constant 0 : index
    %1 = vector.load %arg2[%c0_1, %c0_2] : memref<8x256xf32, #tpu.memory_space<vmem>>, vector<8x256xf32>
    tpu.vector_store %arg2[%c0_1, %c0_2], %0 {strides = array<i32>} : memref<8x256xf32, #tpu.memory_space<vmem>>, vector<8x256xf32>,
    return
  }
  func.func @transform_0(%arg0: i32) -> (i32, i32) {
    %c0_i32 = arith.constant 0 : i32
    %c0_i32_0 = arith.constant 0 : i32
    return %arg0, %c0_i32 : i32, i32
  }
  func.func @transform_1(%arg0: i32) -> (i32, i32) {
    %c0_i32 = arith.constant 0 : i32
    %c0_i32_0 = arith.constant 0 : i32
    return %arg0, %c0_i32 : i32, i32
  }
}

</mosaic_0001>

<llo_original>
// kernel: tpu_custom_call.1
$region0: #{tpu_custom_call.1}
  #allocation0 [shape = 'u32[]', space=smem, size = 0x4, offset = 0x4, fixed_abs, tag = 'smem constant byte address 0x4 - core index']
  #allocation1 [shape = 'u32[144,128]{1,0:T(1,128)}', space=vmem, size = 0x12000, scoped, tag = 'internal scratch']
  %s0 = inlined_call_operand.hbm [shape: f32[8,256], index: 0, kind: input, shape index: {}]
  %s1 = inlined_call_operand.hbm [shape: f32[8,256], index: 1, kind: output, shape index: {}]
  %s2 = sld [smem:[#allocation0]]
  $region18: #{tpu_custom_call.1} parent=0
    _
  %s4 = ssub.s32 1, %s2
  %s5 = scalar_select 0, %s4, %s2
  $region1: #{tpu_custom_call.1} parent=0
    #allocation2 [shape = 'u8[8192]{0}', space=vmem, size = 0x2000, scoped, tag = 'input window, operand 0, single buffered']
    #allocation3 [shape = 's32[1]{0}', space=sflag, size = 0x4, scoped, tag = 'scoped memory for tpu_custom_call.1']
    #allocation4 [shape = 's32[1]{0}', space=sflag, size = 0x4, scoped, tag = 'scoped memory for tpu_custom_call.1']
    #allocation5 [shape = 'u8[8192]{0}', space=vmem, size = 0x2000, scoped, tag = 'output window, operand 0, single buffered']
    %6 = vsyncpa [#allocation3], 0
    %7 = vsyncpa [#allocation4], 0
    // Predicated region
    $region2: #{tpu_custom_call.1} parent=1 // pred_check
      _
    $region3: #{tpu_custom_call.1} parent=1 // pred_check_branch
      %9 = sbr.rel (0) target = $region5
    $region4: #{tpu_custom_call.1} parent=1 // pred_region
      %s11 = ssub.s32 256, 256
      %12 = vsyncadd [#allocation3], %s11
      %s14 = sshll.u32 [#allocation2], 4
      %s15 = int_to_ptr.vmem [resolvable:$true] %s14
      %17 = dma.hbm_to_vmem [thread:$0]  %s0, 256, %s15, [#allocation3]
    $region5: #{tpu_custom_call.1} parent=1 // pred_fallthru
      _
    // Predicated region
    $region6: #{tpu_custom_call.1} parent=1 // pred_check
      _
    $region7: #{tpu_custom_call.1} parent=1 // pred_check_branch
      %19 = sbr.rel (0) target = $region9
    $region8: #{tpu_custom_call.1} parent=1 // pred_region
      %20 = dma.done [#allocation3], 256
    $region9: #{tpu_custom_call.1} parent=1 // pred_fallthru
      _
    %v21 = vld [vmem:[#allocation2] sm:$0xff]
    %v22 = vld [vmem:[#allocation2 + $0x8] sm:$0xff]
    %23 = vst [vmem:[#allocation5] sm:$0xff] %v21
    %24 = vst [vmem:[#allocation5 + $0x8] sm:$0xff] %v22
    // Predicated region
    $region10: #{tpu_custom_call.1} parent=1 // pred_check
      _
    $region11: #{tpu_custom_call.1} parent=1 // pred_check_branch
      %26 = sbr.rel (0) target = $region13
    $region12: #{tpu_custom_call.1} parent=1 // pred_region
      %s28 = ssub.s32 256, 256
      %29 = vsyncadd [#allocation4], %s28
      %s31 = sshll.u32 [#allocation5], 4
      %s32 = int_to_ptr.vmem [resolvable:$true] %s31
      %34 = dma.vmem_to_hbm [thread:$0]  %s32, 256, %s1, [#allocation4]
    $region13: #{tpu_custom_call.1} parent=1 // pred_fallthru
      _
    // Predicated region
    $region14: #{tpu_custom_call.1} parent=1 // pred_check
      _
    $region15: #{tpu_custom_call.1} parent=1 // pred_check_branch
      %36 = sbr.rel (0) target = $region17
    $region16: #{tpu_custom_call.1} parent=1 // pred_region
      %37 = dma.done [#allocation4], 256
    $region17: #{tpu_custom_call.1} parent=1 // pred_fallthru
      _
    %38 = vsyncpa [#allocation3], 1
    %39 = vsyncpa [#allocation4], 1

</llo_original>
